<compile_context>
chip_gen: v6e
topology: v6e:2x2x1
jax: 0.10.0
libtpu: 0.0.40
codegen_flags: <defaults>
</compile_context>

<pallas_src>
import functools
import math

import jax
import jax.numpy as jnp
import numpy as np
from jax.experimental import pallas as pl
from jax.experimental.pallas import tpu as pltpu


LANE = 128          # channel-padding target (lane-dense stores / MXU column fill)
SUBLANE_BF16 = 16   # bf16 sublane packing for the node dimension


def _round_up(x, m):
    return (x + m - 1) // m * m


# ----------------------------------------------------------------------------
# Fused Pallas kernel: all GNN layers + head in a single pallas_call
# ----------------------------------------------------------------------------
def _fused_gnn_kernel(a_ref, x_ref, w_ref, b_ref, wh_ref, bh_ref, o_ref,
                      *, n_layers, c_pad):
    # A (mean adjacency, bf16) and the stacked weights stay in VMEM for the whole
    # network; X is carried between layers as values (static unroll, no scratch
    # store/reload per layer).
    a = a_ref[...]                                   # [Np, Np] bf16
    x = x_ref[...]                                   # [Np, Cp] bf16

    for i in range(n_layers):                        # static unroll (n_layers is Python)
        # One wide matmul against stacked weights [W_l | W_c]  -> [Np, 2*Cp] f32.
        y = jnp.dot(x, w_ref[i], preferred_element_type=jnp.float32)
        y_l = y[:, :c_pad].astype(jnp.bfloat16)      # neighbor path (128-aligned slice)
        y_c = y[:, c_pad:]                           # central + skip path, kept f32
        # Mean aggregation as dense matmul: A_mean @ (X @ W_l), K = c_pad.
        agg = jnp.dot(a, y_l, preferred_element_type=jnp.float32)
        z = agg + y_c + b_ref[i]                     # fused bias (b_l + b_skip), f32
        if i != n_layers - 1:
            z = jnp.maximum(z, 0.0)                  # ReLU on all but the last GNN layer
        x = z.astype(jnp.bfloat16)

    # Head linear; single lane-dense (128-wide) store of the padded output slab.
    out = jnp.dot(x, wh_ref[...], preferred_element_type=jnp.float32) + bh_ref[...]
    o_ref[...] = out.astype(o_ref.dtype)


def fused_forward_padded(a_p, x0_p, w_stack, b_stack, w_head, b_head):
    """Run the fully-fused network on padded, bf16 operands."""
    n_layers = w_stack.shape[0]
    n_pad, c_pad = x0_p.shape
    h_pad = w_head.shape[1]

    kern = functools.partial(_fused_gnn_kernel, n_layers=n_layers, c_pad=c_pad)

    # Explicit scoped-VMEM budget: all inputs + output + live intermediates, with slack.
    needed = (a_p.size * 2 + x0_p.size * 2 + w_stack.size * 2 + b_stack.size * 4
              + w_head.size * 2 + b_head.size * 4
              + n_pad * h_pad * 4 + n_pad * 2 * c_pad * 4)
    vmem_limit = int(min(60 * 1024 * 1024,
                         max(2 * needed + (4 << 20), 16 * 1024 * 1024)))

    return pl.pallas_call(
        kern,
        out_shape=jax.ShapeDtypeStruct((n_pad, h_pad), jnp.float32),
        grid=(1,),
        in_specs=[
            pl.BlockSpec((n_pad, n_pad), lambda i: (0, 0)),                  # A_mean (bf16)
            pl.BlockSpec((n_pad, c_pad), lambda i: (0, 0)),                  # X0 (bf16)
            pl.BlockSpec((n_layers, c_pad, 2 * c_pad), lambda i: (0, 0, 0)),  # [W_l|W_c] stack
            pl.BlockSpec((n_layers, 1, c_pad), lambda i: (0, 0, 0)),         # fused biases (f32)
            pl.BlockSpec((c_pad, h_pad), lambda i: (0, 0)),                  # head weight (bf16)
            pl.BlockSpec((1, h_pad), lambda i: (0, 0)),                      # head bias (f32)
        ],
        out_specs=pl.BlockSpec((n_pad, h_pad), lambda i: (0, 0)),
        compiler_params=pltpu.CompilerParams(
            dimension_semantics=("arbitrary",),
            vmem_limit_bytes=vmem_limit),
    )(a_p, x0_p, w_stack, b_stack, w_head, b_head)


# ----------------------------------------------------------------------------
# Glue (plain JAX): positional encoding, adjacency, parameter init / packing
# ----------------------------------------------------------------------------
# TODO(synk): the PositionalEncoding class source was not provided; we assume the
# standard sinusoidal encoding (sin on even, cos on odd slots, frequency base
# `max_len`), n_encoding_dims/n_position_dims features per coordinate dimension.
def positional_encoding(coords, n_encoding_dims=64, max_len=100):
    n_pos_dims = coords.shape[-1]
    d = n_encoding_dims // n_pos_dims
    div_term = jnp.exp(jnp.arange(0, d, 2, dtype=jnp.float32)
                       * (-math.log(float(max_len)) / d))              # [d/2]
    ang = coords[:, :, None] * div_term[None, None, :]                 # [N, P, d/2]
    # Interleave sin/cos via stack+reshape (no strided scatters).
    pe = jnp.stack([jnp.sin(ang), jnp.cos(ang)], axis=-1)              # [N, P, d/2, 2]
    return pe.reshape(coords.shape[0], n_pos_dims * d)                 # [N, n_encoding_dims]


def build_mean_adjacency(edge_index, n_nodes):
    # edge_index[0] = source, edge_index[1] = target (PyG convention); mean aggregation
    # at the target node; nodes with no in-edges get a zero row (PyG `mean` behavior).
    src, dst = edge_index[0], edge_index[1]
    a = jnp.zeros((n_nodes, n_nodes), dtype=jnp.float32).at[dst, src].add(1.0)
    deg = a.sum(axis=1, keepdims=True)
    return jnp.where(deg > 0, a / jnp.maximum(deg, 1.0), 0.0)


def init_params(key, in_dim, channel_counts, head_dim):
    params = {"layers": []}
    c_in = in_dim
    for c_out in channel_counts:
        key, k1, k2, k3, k4, k5 = jax.random.split(key, 6)
        params["layers"].append({
            "w_l": 0.1 * jax.random.normal(k1, (c_in, c_out), jnp.float32),     # SAGEConv.lin_l
            "b_l": 0.1 * jax.random.normal(k2, (c_out,), jnp.float32),
            "w_r": 0.1 * jax.random.normal(k3, (c_in, c_out), jnp.float32),     # SAGEConv.lin_r
            "w_skip": 0.1 * jax.random.normal(k4, (c_in, c_out), jnp.float32),  # gnn.Linear skip
            "b_skip": 0.1 * jax.random.normal(k5, (c_out,), jnp.float32),
        })
        c_in = c_out
    key, k1, k2 = jax.random.split(key, 3)
    params["head_w"] = 0.1 * jax.random.normal(k1, (c_in, head_dim), jnp.float32)
    params["head_b"] = 0.1 * jax.random.normal(k2, (head_dim,), jnp.float32)
    return params


def pack_params(params, in_dim, channel_counts, head_dim, c_pad, h_pad):
    """Zero-pad, fuse (w_r + w_skip, b_l + b_skip), stack per-layer, cast to bf16."""
    ws, bs = [], []
    c_in = in_dim
    for lp, c_out in zip(params["layers"], channel_counts):
        w_l = jnp.zeros((c_pad, c_pad), jnp.float32).at[:c_in, :c_out].set(lp["w_l"])
        w_c = jnp.zeros((c_pad, c_pad), jnp.float32).at[:c_in, :c_out].set(lp["w_r"] + lp["w_skip"])
        ws.append(jnp.concatenate([w_l, w_c], axis=1))                 # [Cp, 2*Cp]
        bs.append(jnp.zeros((1, c_pad), jnp.float32).at[0, :c_out].set(lp["b_l"] + lp["b_skip"]))
        c_in = c_out
    w_stack = jnp.stack(ws).astype(jnp.bfloat16)                       # [L, Cp, 2*Cp] bf16
    b_stack = jnp.stack(bs)                                            # [L, 1, Cp]    f32
    w_head = (jnp.zeros((c_pad, h_pad), jnp.float32)
              .at[:c_in, :head_dim].set(params["head_w"]).astype(jnp.bfloat16))
    b_head = jnp.zeros((1, h_pad), jnp.float32).at[0, :head_dim].set(params["head_b"])
    return w_stack, b_stack, w_head, b_head


def forward(params, coords, edge_index, n_nodes, channel_counts, head_dim, n_encoding_dims=64):
    x0 = positional_encoding(coords, n_encoding_dims)                  # [N, 64] f32
    a = build_mean_adjacency(edge_index, n_nodes)                      # [N, N] f32

    n_pad = _round_up(max(n_nodes, SUBLANE_BF16), SUBLANE_BF16)
    c_pad = _round_up(max([n_encoding_dims] + list(channel_counts)), LANE)
    h_pad = _round_up(max(head_dim, 1), LANE)

    a_p = (jnp.zeros((n_pad, n_pad), jnp.float32)
           .at[:n_nodes, :n_nodes].set(a).astype(jnp.bfloat16))
    x0_p = (jnp.zeros((n_pad, c_pad), jnp.float32)
            .at[:n_nodes, :n_encoding_dims].set(x0).astype(jnp.bfloat16))
    w_stack, b_stack, w_head, b_head = pack_params(
        params, n_encoding_dims, channel_counts, head_dim, c_pad, h_pad)

    out_p = fused_forward_padded(a_p, x0_p, w_stack, b_stack, w_head, b_head)
    return out_p[:n_nodes, :head_dim]


def forward_reference(params, coords, edge_index, n_nodes, channel_counts, head_dim,
                      n_encoding_dims=64):
    """Pure-JAX reference: original module math at matching (bf16 in / f32 acc) precision."""
    x = positional_encoding(coords, n_encoding_dims).astype(jnp.bfloat16)
    a = build_mean_adjacency(edge_index, n_nodes).astype(jnp.bfloat16)
    n_layers = len(params["layers"])
    for i, lp in enumerate(params["layers"]):
        w_l = lp["w_l"].astype(jnp.bfloat16)
        w_c = (lp["w_r"] + lp["w_skip"]).astype(jnp.bfloat16)
        b = (lp["b_l"] + lp["b_skip"])[None, :]
        y_l = jnp.dot(x, w_l, preferred_element_type=jnp.float32).astype(jnp.bfloat16)
        y_c = jnp.dot(x, w_c, preferred_element_type=jnp.float32)
        agg = jnp.dot(a, y_l, preferred_element_type=jnp.float32)      # A @ (X @ W_l)
        z = agg + y_c + b
        x = (jnp.maximum(z, 0.0) if i != n_layers - 1 else z).astype(jnp.bfloat16)
    out = jnp.dot(x, params["head_w"].astype(jnp.bfloat16), preferred_element_type=jnp.float32)
    return out + params["head_b"][None, :]


# ----------------------------------------------------------------------------
if __name__ == "__main__":
    N_NODES = 50
    N_EDGES = 200
    IN_DIM = 64              # n_encoding_dims
    CHANNEL_COUNTS = [32, 32]
    HEAD_DIM = 8
    POS_MAX = 100.0

    key = jax.random.PRNGKey(0)
    k_coords, k_src, k_dst, k_params = jax.random.split(key, 4)

    coords = jax.random.uniform(k_coords, (N_NODES, 2), jnp.float32, 0.0, POS_MAX)
    src = jax.random.randint(k_src, (N_EDGES,), 0, N_NODES)
    dst = jax.random.randint(k_dst, (N_EDGES,), 0, N_NODES)
    edge_index = jnp.stack([src, dst], axis=0)  # [2, E]

    params = init_params(k_params, IN_DIM, CHANNEL_COUNTS, HEAD_DIM)

    out = forward(params, coords, edge_index, N_NODES, CHANNEL_COUNTS, HEAD_DIM, IN_DIM)
    out = jax.block_until_ready(out)

    ref = forward_reference(params, coords, edge_index, N_NODES, CHANNEL_COUNTS, HEAD_DIM, IN_DIM)
    np.testing.assert_allclose(np.asarray(out), np.asarray(ref), rtol=2e-3, atol=2e-3)
    assert out.shape == (N_NODES, HEAD_DIM)

    print("KERNEL_OK")
</pallas_src>

<mosaic_0001>
module attributes {stable_mosaic.version = 11 : i64} {
  func.func @_fused_gnn_kernel(%arg0: i32, %arg1: memref<64x64xbf16, #tpu.memory_space<vmem>>, %arg2: memref<64x128xbf16, #tpu.memory_space<vmem>>, %arg3: memref<2x128x256xbf16, #tpu.memory_space<vmem>>, %arg4: memref<2x1x128xf32, #tpu.memory_space<vmem>>, %arg5: memref<128x128xbf16, #tpu.memory_space<vmem>>, %arg6: memref<1x128xf32, #tpu.memory_space<vmem>>, %arg7: memref<64x128xf32, #tpu.memory_space<vmem>>) attributes {dimension_semantics = [#tpu.dimension_semantics<arbitrary>], iteration_bounds = array<i64: 1>, scalar_prefetch = 0 : i64, scratch_operands = 0 : i64, tpu.core_type = #tpu.core_type<tc>, window_params = [{pipeline_mode = #tpu.pipeline_mode<synchronous>, transform_indices = @transform_0, window_bounds = array<i64: 64, 64>}, {pipeline_mode = #tpu.pipeline_mode<synchronous>, transform_indices = @transform_1, window_bounds = array<i64: 64, 128>}, {pipeline_mode = #tpu.pipeline_mode<synchronous>, transform_indices = @transform_2, window_bounds = array<i64: 2, 128, 256>}, {pipeline_mode = #tpu.pipeline_mode<synchronous>, transform_indices = @transform_3, window_bounds = array<i64: 2, 1, 128>}, {pipeline_mode = #tpu.pipeline_mode<synchronous>, transform_indices = @transform_4, window_bounds = array<i64: 128, 128>}, {pipeline_mode = #tpu.pipeline_mode<synchronous>, transform_indices = @transform_5, window_bounds = array<i64: 1, 128>}, {pipeline_mode = #tpu.pipeline_mode<synchronous>, transform_indices = @transform_6, window_bounds = array<i64: 64, 128>}]} {
    %c0 = arith.constant 0 : index
    %c0_0 = arith.constant 0 : index
    %0 = vector.load %arg1[%c0, %c0_0] : memref<64x64xbf16, #tpu.memory_space<vmem>>, vector<64x64xbf16>
    %c0_1 = arith.constant 0 : index
    %c0_2 = arith.constant 0 : index
    %1 = vector.load %arg2[%c0_1, %c0_2] : memref<64x128xbf16, #tpu.memory_space<vmem>>, vector<64x128xbf16>
    %c0_3 = arith.constant 0 : index
    %c0_4 = arith.constant 0 : index
    %c0_5 = arith.constant 0 : index
    %2 = vector.load %arg3[%c0_3, %c0_4, %c0_5] : memref<2x128x256xbf16, #tpu.memory_space<vmem>>, vector<1x128x256xbf16>
    %3 = vector.shape_cast %2 : vector<1x128x256xbf16> to vector<128x256xbf16>
    %cst = arith.constant dense<0.000000e+00> : vector<64x256xf32>
    %4 = tpu.matmul %1, %3, %cst {dimension_numbers = #tpu.dot_dimension_numbers<[1], [0], [0], [1], [0, 0, 1, 1], [], []>} : vector<64x128xbf16>, vector<128x256xbf16>, vector<64x256xf32> -> vector<64x256xf32>
    %5 = vector.extract_strided_slice %4 {offsets = [0, 0], sizes = [64, 128], strides = [1, 1]} : vector<64x256xf32> to vector<64x128xf32>
    %6 = arith.truncf %5 : vector<64x128xf32> to vector<64x128xbf16>
    %7 = vector.extract_strided_slice %4 {offsets = [0, 128], sizes = [64, 128], strides = [1, 1]} : vector<64x256xf32> to vector<64x128xf32>
    %cst_6 = arith.constant dense<0.000000e+00> : vector<64x128xf32>
    %8 = tpu.matmul %0, %6, %cst_6 {dimension_numbers = #tpu.dot_dimension_numbers<[1], [0], [0], [1], [0, 0, 1, 1], [], []>} : vector<64x64xbf16>, vector<64x128xbf16>, vector<64x128xf32> -> vector<64x128xf32>
    %9 = arith.addf %8, %7 : vector<64x128xf32>
    %c0_7 = arith.constant 0 : index
    %c0_8 = arith.constant 0 : index
    %c0_9 = arith.constant 0 : index
    %10 = vector.load %arg4[%c0_7, %c0_8, %c0_9] : memref<2x1x128xf32, #tpu.memory_space<vmem>>, vector<1x1x128xf32>
    %11 = vector.shape_cast %10 : vector<1x1x128xf32> to vector<1x128xf32>
    %12 = vector.broadcast %11 : vector<1x128xf32> to vector<64x128xf32>
    %13 = arith.addf %9, %12 : vector<64x128xf32>
    %cst_10 = arith.constant 0.000000e+00 : f32
    %14 = vector.broadcast %cst_10 : f32 to vector<64x128xf32>
    %15 = arith.maximumf %13, %14 : vector<64x128xf32>
    %16 = arith.truncf %15 : vector<64x128xf32> to vector<64x128xbf16>
    %c1 = arith.constant 1 : index
    %c0_11 = arith.constant 0 : index
    %c0_12 = arith.constant 0 : index
    %17 = vector.load %arg3[%c1, %c0_11, %c0_12] : memref<2x128x256xbf16, #tpu.memory_space<vmem>>, vector<1x128x256xbf16>
    %18 = vector.shape_cast %17 : vector<1x128x256xbf16> to vector<128x256xbf16>
    %cst_13 = arith.constant dense<0.000000e+00> : vector<64x256xf32>
    %19 = tpu.matmul %16, %18, %cst_13 {dimension_numbers = #tpu.dot_dimension_numbers<[1], [0], [0], [1], [0, 0, 1, 1], [], []>} : vector<64x128xbf16>, vector<128x256xbf16>, vector<64x256xf32> -> vector<64x256xf32>
    %20 = vector.extract_strided_slice %19 {offsets = [0, 0], sizes = [64, 128], strides = [1, 1]} : vector<64x256xf32> to vector<64x128xf32>
    %21 = arith.truncf %20 : vector<64x128xf32> to vector<64x128xbf16>
    %22 = vector.extract_strided_slice %19 {offsets = [0, 128], sizes = [64, 128], strides = [1, 1]} : vector<64x256xf32> to vector<64x128xf32>
    %cst_14 = arith.constant dense<0.000000e+00> : vector<64x128xf32>
    %23 = tpu.matmul %0, %21, %cst_14 {dimension_numbers = #tpu.dot_dimension_numbers<[1], [0], [0], [1], [0, 0, 1, 1], [], []>} : vector<64x64xbf16>, vector<64x128xbf16>, vector<64x128xf32> -> vector<64x128xf32>
    %24 = arith.addf %23, %22 : vector<64x128xf32>
    %c1_15 = arith.constant 1 : index
    %c0_16 = arith.constant 0 : index
    %c0_17 = arith.constant 0 : index
    %25 = vector.load %arg4[%c1_15, %c0_16, %c0_17] : memref<2x1x128xf32, #tpu.memory_space<vmem>>, vector<1x1x128xf32>
    %26 = vector.shape_cast %25 : vector<1x1x128xf32> to vector<1x128xf32>
    %27 = vector.broadcast %26 : vector<1x128xf32> to vector<64x128xf32>
    %28 = arith.addf %24, %27 : vector<64x128xf32>
    %29 = arith.truncf %28 : vector<64x128xf32> to vector<64x128xbf16>
    %c0_18 = arith.constant 0 : index
    %c0_19 = arith.constant 0 : index
    %30 = vector.load %arg5[%c0_18, %c0_19] : memref<128x128xbf16, #tpu.memory_space<vmem>>, vector<128x128xbf16>
    %cst_20 = arith.constant dense<0.000000e+00> : vector<64x128xf32>
    %31 = tpu.matmul %29, %30, %cst_20 {dimension_numbers = #tpu.dot_dimension_numbers<[1], [0], [0], [1], [0, 0, 1, 1], [], []>} : vector<64x128xbf16>, vector<128x128xbf16>, vector<64x128xf32> -> vector<64x128xf32>
    %c0_21 = arith.constant 0 : index
    %c0_22 = arith.constant 0 : index
    %32 = vector.load %arg6[%c0_21, %c0_22] : memref<1x128xf32, #tpu.memory_space<vmem>>, vector<1x128xf32>
    %33 = vector.broadcast %32 : vector<1x128xf32> to vector<64x128xf32>
    %34 = arith.addf %31, %33 : vector<64x128xf32>
    %c0_23 = arith.constant 0 : index
    %c0_24 = arith.constant 0 : index
    %35 = vector.load %arg7[%c0_23, %c0_24] : memref<64x128xf32, #tpu.memory_space<vmem>>, vector<64x128xf32>
    tpu.vector_store %arg7[%c0_23, %c0_24], %34 {strides = array<i32>} : memref<64x128xf32, #tpu.memory_space<vmem>>, vector<64x128xf32>,
    return
  }
  func.func @transform_0(%arg0: i32) -> (i32, i32) {
    %c0_i32 = arith.constant 0 : i32
    %c0_i32_0 = arith.constant 0 : i32
    %c0_i32_1 = arith.constant 0 : i32
    return %c0_i32, %c0_i32_0 : i32, i32
  }
  func.func @transform_1(%arg0: i32) -> (i32, i32) {
    %c0_i32 = arith.constant 0 : i32
    %c0_i32_0 = arith.constant 0 : i32
    %c0_i32_1 = arith.constant 0 : i32
    return %c0_i32, %c0_i32_0 : i32, i32
  }
  func.func @transform_2(%arg0: i32) -> (i32, i32, i32) {
    %c0_i32 = arith.constant 0 : i32
    %c0_i32_0 = arith.constant 0 : i32
    %c0_i32_1 = arith.constant 0 : i32
    %c0_i32_2 = arith.constant 0 : i32
    return %c0_i32, %c0_i32_0, %c0_i32_1 : i32, i32, i32
  }
  func.func @transform_3(%arg0: i32) -> (i32, i32, i32) {
    %c0_i32 = arith.constant 0 : i32
    %c0_i32_0 = arith.constant 0 : i32
    %c0_i32_1 = arith.constant 0 : i32
    %c0_i32_2 = arith.constant 0 : i32
    return %c0_i32, %c0_i32_0, %c0_i32_1 : i32, i32, i32
  }
  func.func @transform_4(%arg0: i32) -> (i32, i32) {
    %c0_i32 = arith.constant 0 : i32
    %c0_i32_0 = arith.constant 0 : i32
    %c0_i32_1 = arith.constant 0 : i32
    return %c0_i32, %c0_i32_0 : i32, i32
  }
  func.func @transform_5(%arg0: i32) -> (i32, i32) {
    %c0_i32 = arith.constant 0 : i32
    %c0_i32_0 = arith.constant 0 : i32
    %c0_i32_1 = arith.constant 0 : i32
    return %c0_i32, %c0_i32_0 : i32, i32
  }
  func.func @transform_6(%arg0: i32) -> (i32, i32) {
    %c0_i32 = arith.constant 0 : i32
    %c0_i32_0 = arith.constant 0 : i32
    %c0_i32_1 = arith.constant 0 : i32
    return %c0_i32, %c0_i32_0 : i32, i32
  }
}

</mosaic_0001>

<llo_original>
// kernel: tpu_custom_call.1
$region0: #{tpu_custom_call.1}
  #allocation0 [shape = 'u32[]', space=smem, size = 0x4, offset = 0x4, fixed_abs, tag = 'smem constant byte address 0x4 - core index']
  #allocation1 [shape = 'u32[144,128]{1,0:T(1,128)}', space=vmem, size = 0x12000, scoped, tag = 'internal scratch']
  %s0 = inlined_call_operand.hbm [shape: bf16[64,64], index: 0, kind: input, shape index: {}]
  %s1 = inlined_call_operand.hbm [shape: bf16[64,128], index: 1, kind: input, shape index: {}]
  %s2 = inlined_call_operand.hbm [shape: bf16[2,128,256], index: 2, kind: input, shape index: {}]
  %s3 = inlined_call_operand.vmem [shape: f32[2,1,128], index: 3, kind: input, shape index: {}]
  %s4 = inlined_call_operand.hbm [shape: bf16[128,128], index: 4, kind: input, shape index: {}]
  %s5 = inlined_call_operand.vmem [shape: f32[1,128], index: 5, kind: input, shape index: {}]
  %s6 = inlined_call_operand.hbm [shape: f32[64,128], index: 6, kind: output, shape index: {}]
  %s7 = sld [smem:[#allocation0]]
  $region50: #{tpu_custom_call.1} parent=0
    _
  %s9 = ssub.s32 1, %s7
  %s10 = scalar_select 0, %s9, %s7
  $region1: #{tpu_custom_call.1} parent=0
    #allocation2 [shape = 'u8[16384]{0}', space=vmem, size = 0x4000, scoped, tag = 'input window, operand 0, single buffered']
    #allocation3 [shape = 's32[1]{0}', space=sflag, size = 0x4, scoped, tag = 'scoped memory for tpu_custom_call.1']
    #allocation4 [shape = 's32[1]{0}', space=sflag, size = 0x4, scoped, tag = 'scoped memory for tpu_custom_call.1']
    #allocation5 [shape = 'u8[16384]{0}', space=vmem, size = 0x4000, scoped, tag = 'input window, operand 1, single buffered']
    #allocation6 [shape = 's32[1]{0}', space=sflag, size = 0x4, scoped, tag = 'scoped memory for tpu_custom_call.1']
    #allocation7 [shape = 'u8[131072]{0}', space=vmem, size = 0x20000, scoped, tag = 'input window, operand 2, single buffered']
    #allocation8 [shape = 'u8[32768]{0}', space=vmem, size = 0x8000, scoped, tag = 'input window, operand 4, single buffered']
    #allocation9 [shape = 's32[1]{0}', space=sflag, size = 0x4, scoped, tag = 'scoped memory for tpu_custom_call.1']
    #allocation10 [shape = 'u8[32768]{0}', space=vmem, size = 0x8000, scoped, tag = 'output window, operand 0, single buffered']
    %11 = vsyncpa [#allocation3], 0
    %12 = vsyncpa [#allocation6], 0
    %13 = vsyncpa [#allocation9], 0
    %14 = vsyncpa [#allocation4], 0
    // Predicated region
    $region2: #{tpu_custom_call.1} parent=1 // pred_check
      _
    $region3: #{tpu_custom_call.1} parent=1 // pred_check_branch
      %16 = sbr.rel (0) target = $region5
    $region4: #{tpu_custom_call.1} parent=1 // pred_region
      %s18 = ssub.s32 512, 512
      %19 = vsyncadd [#allocation3], %s18
      %s20 = sshll.u32 [#allocation2], 4
      %s21 = int_to_ptr.vmem [resolvable:$true] %s20
      %26 = dma.hbm_to_vmem [thread:$0]  %s0, 512, %s21, [#allocation3], 64, 64, 4
    $region5: #{tpu_custom_call.1} parent=1 // pred_fallthru
      _
    // Predicated region
    $region6: #{tpu_custom_call.1} parent=1 // pred_check
      _
    $region7: #{tpu_custom_call.1} parent=1 // pred_check_branch
      %28 = sbr.rel (0) target = $region9
    $region8: #{tpu_custom_call.1} parent=1 // pred_region
      %s30 = ssub.s32 512, 512
      %31 = vsyncadd [#allocation6], %s30
      %s32 = sshll.u32 [#allocation5], 4
      %s33 = int_to_ptr.vmem [resolvable:$true] %s32
      %38 = dma.hbm_to_vmem [thread:$0]  %s1, 512, %s33, [#allocation6], 64, 64, 4
    $region9: #{tpu_custom_call.1} parent=1 // pred_fallthru
      _
    // Predicated region
    $region10: #{tpu_custom_call.1} parent=1 // pred_check
      _
    $region11: #{tpu_custom_call.1} parent=1 // pred_check_branch
      %40 = sbr.rel (0) target = $region13
    $region12: #{tpu_custom_call.1} parent=1 // pred_region
      %s42 = ssub.s32 4096, 4096
      %43 = vsyncadd [#allocation6], %s42
      %s44 = sshll.u32 [#allocation7], 4
      %s45 = int_to_ptr.vmem [resolvable:$true] %s44
      %50 = dma.hbm_to_vmem [thread:$0]  %s2, 4096, %s45, [#allocation6], 128, 128, 8
    $region13: #{tpu_custom_call.1} parent=1 // pred_fallthru
      _
    // Predicated region
    $region14: #{tpu_custom_call.1} parent=1 // pred_check
      _
    $region15: #{tpu_custom_call.1} parent=1 // pred_check_branch
      %52 = sbr.rel (0) target = $region17
    $region16: #{tpu_custom_call.1} parent=1 // pred_region
      _
    $region17: #{tpu_custom_call.1} parent=1 // pred_fallthru
      _
    // Predicated region
    $region18: #{tpu_custom_call.1} parent=1 // pred_check
      _
    $region19: #{tpu_custom_call.1} parent=1 // pred_check_branch
      %54 = sbr.rel (0) target = $region21
    $region20: #{tpu_custom_call.1} parent=1 // pred_region
      %s56 = ssub.s32 1024, 1024
      %57 = vsyncadd [#allocation9], %s56
      %s58 = sshll.u32 [#allocation8], 4
      %s59 = int_to_ptr.vmem [resolvable:$true] %s58
      %64 = dma.hbm_to_vmem [thread:$0]  %s4, 1024, %s59, [#allocation9], 64, 64, 4
    $region21: #{tpu_custom_call.1} parent=1 // pred_fallthru
      _
    // Predicated region
    $region22: #{tpu_custom_call.1} parent=1 // pred_check
      _
    $region23: #{tpu_custom_call.1} parent=1 // pred_check_branch
      %66 = sbr.rel (0) target = $region25
    $region24: #{tpu_custom_call.1} parent=1 // pred_region
      _
    $region25: #{tpu_custom_call.1} parent=1 // pred_fallthru
      _
    // Predicated region
    $region26: #{tpu_custom_call.1} parent=1 // pred_check
      _
    $region27: #{tpu_custom_call.1} parent=1 // pred_check_branch
      %68 = sbr.rel (0) target = $region29
    $region28: #{tpu_custom_call.1} parent=1 // pred_region
      %69 = dma.done [#allocation3], 512
    $region29: #{tpu_custom_call.1} parent=1 // pred_fallthru
      _
    // Predicated region
    $region30: #{tpu_custom_call.1} parent=1 // pred_check
      _
    $region31: #{tpu_custom_call.1} parent=1 // pred_check_branch
      %71 = sbr.rel (0) target = $region33
    $region32: #{tpu_custom_call.1} parent=1 // pred_region
      %72 = dma.done [#allocation6], 512
    $region33: #{tpu_custom_call.1} parent=1 // pred_fallthru
      _
    // Predicated region
    $region34: #{tpu_custom_call.1} parent=1 // pred_check
      _
    $region35: #{tpu_custom_call.1} parent=1 // pred_check_branch
      %74 = sbr.rel (0) target = $region37
    $region36: #{tpu_custom_call.1} parent=1 // pred_region
      %75 = dma.done [#allocation6], 4096
    $region37: #{tpu_custom_call.1} parent=1 // pred_fallthru
      _
    // Predicated region
    $region38: #{tpu_custom_call.1} parent=1 // pred_check
      _
    $region39: #{tpu_custom_call.1} parent=1 // pred_check_branch
      %77 = sbr.rel (0) target = $region41
    $region40: #{tpu_custom_call.1} parent=1 // pred_region
      %78 = dma.done [#allocation9], 1024
    $region41: #{tpu_custom_call.1} parent=1 // pred_fallthru
      _
    %v80 = vld [vmem:[#allocation2] sm:$0xf]
    %v81 = vld [vmem:[#allocation2 + $0x4] sm:$0xf]
    %v82 = vld [vmem:[#allocation2 + $0x8] sm:$0xf]
    %v83 = vld [vmem:[#allocation2 + $0xc] sm:$0xf]
    %v84 = vld [vmem:[#allocation2 + $0x10] sm:$0xf]
    %v85 = vld [vmem:[#allocation2 + $0x14] sm:$0xf]
    %v86 = vld [vmem:[#allocation2 + $0x18] sm:$0xf]
    %v87 = vld [vmem:[#allocation2 + $0x1c] sm:$0xf]
    %v88 = vld [vmem:[#allocation5] sm:$0xf]
    %v89 = vld [vmem:[#allocation5 + $0x4] sm:$0xf]
    %v90 = vld [vmem:[#allocation5 + $0x8] sm:$0xf]
    %v91 = vld [vmem:[#allocation5 + $0xc] sm:$0xf]
    %v92 = vld [vmem:[#allocation5 + $0x10] sm:$0xf]
    %v93 = vld [vmem:[#allocation5 + $0x14] sm:$0xf]
    %v94 = vld [vmem:[#allocation5 + $0x18] sm:$0xf]
    %v95 = vld [vmem:[#allocation5 + $0x1c] sm:$0xf]
    %v96 = vld [vmem:[#allocation7] sm:$0xff]
    %v97 = vld [vmem:[#allocation7 + $0x8] sm:$0xff]
    %v98 = vld [vmem:[#allocation7 + $0x10] sm:$0xff]
    %v99 = vld [vmem:[#allocation7 + $0x18] sm:$0xff]
    %v100 = vld [vmem:[#allocation7 + $0x20] sm:$0xff]
    %v101 = vld [vmem:[#allocation7 + $0x28] sm:$0xff]
    %v102 = vld [vmem:[#allocation7 + $0x30] sm:$0xff]
    %v103 = vld [vmem:[#allocation7 + $0x38] sm:$0xff]
    %v104 = vld [vmem:[#allocation7 + $0x40] sm:$0xff]
    %v105 = vld [vmem:[#allocation7 + $0x48] sm:$0xff]
    %v106 = vld [vmem:[#allocation7 + $0x50] sm:$0xff]
    %v107 = vld [vmem:[#allocation7 + $0x58] sm:$0xff]
    %v108 = vld [vmem:[#allocation7 + $0x60] sm:$0xff]
    %v109 = vld [vmem:[#allocation7 + $0x68] sm:$0xff]
    %v110 = vld [vmem:[#allocation7 + $0x70] sm:$0xff]
    %v111 = vld [vmem:[#allocation7 + $0x78] sm:$0xff]
    %v120 = vunpack.c.l.b16 %v88
    %v121 = vunpack.c.l.b16 %v89
    %v122 = vunpack.c.l.b16 %v90
    %v123 = vunpack.c.l.b16 %v91
    %v124 = vunpack.c.l.b16 %v92
    %v125 = vunpack.c.l.b16 %v93
    %v126 = vunpack.c.l.b16 %v94
    %v127 = vunpack.c.l.b16 %v95
    %v128 = vpack.c.b16 %v121, %v120
    %v129 = vpack.c.b16 %v123, %v122
    %v130 = vpack.c.b16 %v125, %v124
    %v131 = vpack.c.b16 %v127, %v126
    %v152 = vunpack.c.l.b16 %v96
    %v153 = vunpack.c.h.b16 %v96
    %v154 = vunpack.c.l.b16 %v97
    %v155 = vunpack.c.h.b16 %v97
    %v156 = vunpack.c.l.b16 %v98
    %v157 = vunpack.c.h.b16 %v98
    %v158 = vunpack.c.l.b16 %v99
    %v159 = vunpack.c.h.b16 %v99
    %v160 = vunpack.c.l.b16 %v100
    %v161 = vunpack.c.h.b16 %v100
    %v162 = vunpack.c.l.b16 %v101
    %v163 = vunpack.c.h.b16 %v101
    %v164 = vunpack.c.l.b16 %v102
    %v165 = vunpack.c.h.b16 %v102
    %v166 = vunpack.c.l.b16 %v103
    %v167 = vunpack.c.h.b16 %v103
    %v168 = vunpack.c.l.b16 %v104
    %v169 = vunpack.c.h.b16 %v104
    %v170 = vunpack.c.l.b16 %v105
    %v171 = vunpack.c.h.b16 %v105
    %v172 = vunpack.c.l.b16 %v106
    %v173 = vunpack.c.h.b16 %v106
    %v174 = vunpack.c.l.b16 %v107
    %v175 = vunpack.c.h.b16 %v107
    %v176 = vunpack.c.l.b16 %v108
    %v177 = vunpack.c.h.b16 %v108
    %v178 = vunpack.c.l.b16 %v109
    %v179 = vunpack.c.h.b16 %v109
    %v180 = vunpack.c.l.b16 %v110
    %v181 = vunpack.c.h.b16 %v110
    %v182 = vunpack.c.l.b16 %v111
    %v183 = vunpack.c.h.b16 %v111
    %v184 = vpack.c.b16 %v154, %v152
    %v185 = vpack.c.b16 %v155, %v153
    %v186 = vpack.c.b16 %v158, %v156
    %v187 = vpack.c.b16 %v159, %v157
    %v188 = vpack.c.b16 %v162, %v160
    %v189 = vpack.c.b16 %v163, %v161
    %v190 = vpack.c.b16 %v166, %v164
    %v191 = vpack.c.b16 %v167, %v165
    %v192 = vpack.c.b16 %v170, %v168
    %v193 = vpack.c.b16 %v171, %v169
    %v194 = vpack.c.b16 %v174, %v172
    %v195 = vpack.c.b16 %v175, %v173
    %v196 = vpack.c.b16 %v178, %v176
    %v197 = vpack.c.b16 %v179, %v177
    %v198 = vpack.c.b16 %v182, %v180
    %v199 = vpack.c.b16 %v183, %v181
    %216 = vmatprep.subr.bf16.mxu0 %v199
    %217 = vmatpush1.bf16.msra.mxu0 %v198
    %218 = vmatprep.subr.bf16.mxu0 %v197
    %219 = vmatpush1.bf16.msra.mxu0 %v196
    %220 = vmatprep.subr.bf16.mxu0 %v195
    %221 = vmatpush1.bf16.msra.mxu0 %v194
    %222 = vmatprep.subr.bf16.mxu0 %v193
    %223 = vmatpush1.bf16.msra.mxu0 %v192
    %224 = vmatprep.subr.bf16.mxu0 %v191
    %225 = vmatpush1.bf16.msra.mxu0 %v190
    %226 = vmatprep.subr.bf16.mxu0 %v189
    %227 = vmatpush1.bf16.msra.mxu0 %v188
    %228 = vmatprep.subr.bf16.mxu0 %v187
    %229 = vmatpush1.bf16.msra.mxu0 %v186
    %230 = vmatprep.subr.bf16.mxu0 %v185
    %231 = vmatpush1.bf16.msra.mxu0 %v184
    %232 = vmatprep.subr.bf16.mxu0 0
    %233 = vmatpush2.bf16.msra.mxu0 0
    %234 = vmatprep.subr.bf16.mxu0 0
    %235 = vmatpush2.bf16.msra.mxu0 0
    %236 = vmatprep.subr.bf16.mxu0 0
    %237 = vmatpush2.bf16.msra.mxu0 0
    %238 = vmatprep.subr.bf16.mxu0 0
    %239 = vmatpush2.bf16.msra.mxu0 0
    %240 = vmatprep.subr.bf16.mxu0 0
    %241 = vmatpush2.bf16.msra.mxu0 0
    %242 = vmatprep.subr.bf16.mxu0 0
    %243 = vmatpush2.bf16.msra.mxu0 0
    %244 = vmatprep.subr.bf16.mxu0 0
    %245 = vmatpush2.bf16.msra.mxu0 0
    %246 = vmatprep.subr.bf16.mxu0 0
    %247 = vmatpush2.bf16.msra.mxu0 0
    %248 = vmatprep.mubr.bf16.mxu0 0
    %249 = vmatmul.mubr.bf16.gmra.mxu0 %v128
    %v250 = vpop.f32.mrf.mxu0
    %v251 = vadd.f32 0.0, %v250
    %v252 = vpop.f32.mrf.mxu0
    %v253 = vadd.f32 0.0, %v252
    %v254 = vpop.f32.mrf.mxu0
    %v255 = vadd.f32 0.0, %v254
    %v256 = vpop.f32.mrf.mxu0
    %v257 = vadd.f32 0.0, %v256
    %258 = vmatprep.mubr.bf16.mxu0 0
    %259 = vmatmul.mubr.bf16.gmra.mxu0 %v129
    %v260 = vpop.f32.mrf.mxu0
    %v261 = vadd.f32 0.0, %v260
    %v262 = vpop.f32.mrf.mxu0
    %v263 = vadd.f32 0.0, %v262
    %v264 = vpop.f32.mrf.mxu0
    %v265 = vadd.f32 0.0, %v264
    %v266 = vpop.f32.mrf.mxu0
    %v267 = vadd.f32 0.0, %v266
    %268 = vmatprep.mubr.bf16.mxu0 0
    %269 = vmatmul.mubr.bf16.gmra.mxu0 %v130
    %v270 = vpop.f32.mrf.mxu0
    %v271 = vadd.f32 0.0, %v270
    %v272 = vpop.f32.mrf.mxu0
    %v273 = vadd.f32 0.0, %v272
    %v274 = vpop.f32.mrf.mxu0
    %v275 = vadd.f32 0.0, %v274
    %v276 = vpop.f32.mrf.mxu0
    %v277 = vadd.f32 0.0, %v276
    %278 = vmatprep.mubr.bf16.mxu0 0
    %279 = vmatmul.mubr.bf16.gmra.mxu0 %v131
    %v280 = vpop.f32.mrf.mxu0
    %v281 = vadd.f32 0.0, %v280
    %v282 = vpop.f32.mrf.mxu0
    %v283 = vadd.f32 0.0, %v282
    %v284 = vpop.f32.mrf.mxu0
    %v285 = vadd.f32 0.0, %v284
    %v286 = vpop.f32.mrf.mxu0
    %v287 = vadd.f32 0.0, %v286
    %288 = vdwg.mxu0
    %v289 = vpack.c.bf16 %v255, %v251
    %v290 = vpack.c.bf16 %v265, %v261
    %v291 = vpack.c.bf16 %v275, %v271
    %v292 = vpack.c.bf16 %v285, %v281
    %v301 = vunpack.c.l.b16 %v80
    %v302 = vunpack.c.l.b16 %v81
    %v303 = vunpack.c.l.b16 %v82
    %v304 = vunpack.c.l.b16 %v83
    %v305 = vunpack.c.l.b16 %v84
    %v306 = vunpack.c.l.b16 %v85
    %v307 = vunpack.c.l.b16 %v86
    %v308 = vunpack.c.l.b16 %v87
    %v309 = vpack.c.b16 %v302, %v301
    %v310 = vpack.c.b16 %v304, %v303
    %v311 = vpack.c.b16 %v306, %v305
    %v312 = vpack.c.b16 %v308, %v307
    %vm313 = vcmask 523264
    %v315 = vsel %vm313, %v309, 0
    %v318 = vsel %vm313, %v310, 0
    %v321 = vsel %vm313, %v311, 0
    %v324 = vsel %vm313, %v312, 0
    %326 = vmatprep.subr.bf16.mxu0 0
    %327 = vmatpush1.bf16.msra.mxu0 0
    %328 = vmatprep.subr.bf16.mxu0 0
    %329 = vmatpush1.bf16.msra.mxu0 0
    %330 = vmatprep.subr.bf16.mxu0 0
    %331 = vmatpush1.bf16.msra.mxu0 0
    %332 = vmatprep.subr.bf16.mxu0 0
    %333 = vmatpush1.bf16.msra.mxu0 0
    %334 = vmatprep.subr.bf16.mxu0 0
    %335 = vmatpush1.bf16.msra.mxu0 %v292
    %336 = vmatprep.subr.bf16.mxu0 0
    %337 = vmatpush1.bf16.msra.mxu0 %v291
    %338 = vmatprep.subr.bf16.mxu0 0
    %339 = vmatpush1.bf16.msra.mxu0 %v290
    %340 = vmatprep.subr.bf16.mxu0 0
    %341 = vmatpush1.bf16.msra.mxu0 %v289
    %342 = vmatprep.subr.bf16.mxu0 0
    %343 = vmatpush2.bf16.msra.mxu0 0
    %344 = vmatprep.subr.bf16.mxu0 0
    %345 = vmatpush2.bf16.msra.mxu0 0
    %346 = vmatprep.subr.bf16.mxu0 0
    %347 = vmatpush2.bf16.msra.mxu0 0
    %348 = vmatprep.subr.bf16.mxu0 0
    %349 = vmatpush2.bf16.msra.mxu0 0
    %350 = vmatprep.subr.bf16.mxu0 0
    %351 = vmatpush2.bf16.msra.mxu0 0
    %352 = vmatprep.subr.bf16.mxu0 0
    %353 = vmatpush2.bf16.msra.mxu0 0
    %354 = vmatprep.subr.bf16.mxu0 0
    %355 = vmatpush2.bf16.msra.mxu0 0
    %356 = vmatprep.subr.bf16.mxu0 0
    %357 = vmatpush2.bf16.msra.mxu0 0
    %358 = vmatprep.mubr.bf16.mxu0 0
    %359 = vmatmul.mubr.bf16.gmra.mxu0 %v315
    %v360 = vpop.f32.mrf.mxu0
    %v361 = vadd.f32 %v253, %v360
    %v362 = vpop.f32.mrf.mxu0
    %v363 = vpop.f32.mrf.mxu0
    %v364 = vadd.f32 %v257, %v363
    %v365 = vpop.f32.mrf.mxu0
    %366 = vmatprep.mubr.bf16.mxu0 0
    %367 = vmatmul.mubr.bf16.gmra.mxu0 %v318
    %v368 = vpop.f32.mrf.mxu0
    %v369 = vadd.f32 %v263, %v368
    %v370 = vpop.f32.mrf.mxu0
    %v371 = vpop.f32.mrf.mxu0
    %v372 = vadd.f32 %v267, %v371
    %v373 = vpop.f32.mrf.mxu0
    %374 = vmatprep.mubr.bf16.mxu0 0
    %375 = vmatmul.mubr.bf16.gmra.mxu0 %v321
    %v376 = vpop.f32.mrf.mxu0
    %v377 = vadd.f32 %v273, %v376
    %v378 = vpop.f32.mrf.mxu0
    %v379 = vpop.f32.mrf.mxu0
    %v380 = vadd.f32 %v277, %v379
    %v381 = vpop.f32.mrf.mxu0
    %382 = vmatprep.mubr.bf16.mxu0 0
    %383 = vmatmul.mubr.bf16.gmra.mxu0 %v324
    %v384 = vpop.f32.mrf.mxu0
    %v385 = vadd.f32 %v283, %v384
    %v386 = vpop.f32.mrf.mxu0
    %v387 = vpop.f32.mrf.mxu0
    %v388 = vadd.f32 %v287, %v387
    %v389 = vpop.f32.mrf.mxu0
    %390 = vdwg.mxu0
    %v391 = vld [vmem:[%s3] sm:$0x1]
    %v393 = vlaneseq
    %v394 = vshrl.u32 %v393, 7
    %v395 = vsub.s32 0, %v394
    %v396 = vrot.slane %v391, %v395
    %v398 = vadd.f32 %v361, %v396
    %v399 = vadd.f32 %v364, %v396
    %v400 = vadd.f32 %v369, %v396
    %v401 = vadd.f32 %v372, %v396
    %v402 = vadd.f32 %v377, %v396
    %v403 = vadd.f32 %v380, %v396
    %v404 = vadd.f32 %v385, %v396
    %v405 = vadd.f32 %v388, %v396
    %v406 = vmax.f32 %v398, 0.0
    %v407 = vmax.f32 %v399, 0.0
    %v408 = vmax.f32 %v400, 0.0
    %v409 = vmax.f32 %v401, 0.0
    %v410 = vmax.f32 %v402, 0.0
    %v411 = vmax.f32 %v403, 0.0
    %v412 = vmax.f32 %v404, 0.0
    %v413 = vmax.f32 %v405, 0.0
    %v414 = vpack.c.bf16 %v407, %v406
    %v415 = vpack.c.bf16 %v409, %v408
    %v416 = vpack.c.bf16 %v411, %v410
    %v417 = vpack.c.bf16 %v413, %v412
    %s418 = scalar_lea.vmem [#allocation7], 128
    %v419 = vld [vmem:[%s418] sm:$0xff]
    %v420 = vld [vmem:[%s418 + $0x8] sm:$0xff]
    %v421 = vld [vmem:[%s418 + $0x10] sm:$0xff]
    %v422 = vld [vmem:[%s418 + $0x18] sm:$0xff]
    %v423 = vld [vmem:[%s418 + $0x20] sm:$0xff]
    %v424 = vld [vmem:[%s418 + $0x28] sm:$0xff]
    %v425 = vld [vmem:[%s418 + $0x30] sm:$0xff]
    %v426 = vld [vmem:[%s418 + $0x38] sm:$0xff]
    %v427 = vld [vmem:[%s418 + $0x40] sm:$0xff]
    %v428 = vld [vmem:[%s418 + $0x48] sm:$0xff]
    %v429 = vld [vmem:[%s418 + $0x50] sm:$0xff]
    %v430 = vld [vmem:[%s418 + $0x58] sm:$0xff]
    %v431 = vld [vmem:[%s418 + $0x60] sm:$0xff]
    %v432 = vld [vmem:[%s418 + $0x68] sm:$0xff]
    %v433 = vld [vmem:[%s418 + $0x70] sm:$0xff]
    %v434 = vld [vmem:[%s418 + $0x78] sm:$0xff]
    %v451 = vunpack.c.l.b16 %v419
    %v452 = vunpack.c.h.b16 %v419
    %v453 = vunpack.c.l.b16 %v420
    %v454 = vunpack.c.h.b16 %v420
    %v455 = vunpack.c.l.b16 %v421
    %v456 = vunpack.c.h.b16 %v421
    %v457 = vunpack.c.l.b16 %v422
    %v458 = vunpack.c.h.b16 %v422
    %v459 = vunpack.c.l.b16 %v423
    %v460 = vunpack.c.h.b16 %v423
    %v461 = vunpack.c.l.b16 %v424
    %v462 = vunpack.c.h.b16 %v424
    %v463 = vunpack.c.l.b16 %v425
    %v464 = vunpack.c.h.b16 %v425
    %v465 = vunpack.c.l.b16 %v426
    %v466 = vunpack.c.h.b16 %v426
    %v467 = vunpack.c.l.b16 %v427
    %v468 = vunpack.c.h.b16 %v427
    %v469 = vunpack.c.l.b16 %v428
    %v470 = vunpack.c.h.b16 %v428
    %v471 = vunpack.c.l.b16 %v429
    %v472 = vunpack.c.h.b16 %v429
    %v473 = vunpack.c.l.b16 %v430
    %v474 = vunpack.c.h.b16 %v430
    %v475 = vunpack.c.l.b16 %v431
    %v476 = vunpack.c.h.b16 %v431
    %v477 = vunpack.c.l.b16 %v432
    %v478 = vunpack.c.h.b16 %v432
    %v479 = vunpack.c.l.b16 %v433
    %v480 = vunpack.c.h.b16 %v433
    %v481 = vunpack.c.l.b16 %v434
    %v482 = vunpack.c.h.b16 %v434
    %v483 = vpack.c.b16 %v453, %v451
    %v484 = vpack.c.b16 %v454, %v452
    %v485 = vpack.c.b16 %v457, %v455
    %v486 = vpack.c.b16 %v458, %v456
    %v487 = vpack.c.b16 %v461, %v459
    %v488 = vpack.c.b16 %v462, %v460
    %v489 = vpack.c.b16 %v465, %v463
    %v490 = vpack.c.b16 %v466, %v464
    %v491 = vpack.c.b16 %v469, %v467
    %v492 = vpack.c.b16 %v470, %v468
    %v493 = vpack.c.b16 %v473, %v471
    %v494 = vpack.c.b16 %v474, %v472
    %v495 = vpack.c.b16 %v477, %v475
    %v496 = vpack.c.b16 %v478, %v476
    %v497 = vpack.c.b16 %v481, %v479
    %v498 = vpack.c.b16 %v482, %v480
    %515 = vmatprep.subr.bf16.mxu0 %v498
    %516 = vmatpush1.bf16.msra.mxu0 %v497
    %517 = vmatprep.subr.bf16.mxu0 %v496
    %518 = vmatpush1.bf16.msra.mxu0 %v495
    %519 = vmatprep.subr.bf16.mxu0 %v494
    %520 = vmatpush1.bf16.msra.mxu0 %v493
    %521 = vmatprep.subr.bf16.mxu0 %v492
    %522 = vmatpush1.bf16.msra.mxu0 %v491
    %523 = vmatprep.subr.bf16.mxu0 %v490
    %524 = vmatpush1.bf16.msra.mxu0 %v489
    %525 = vmatprep.subr.bf16.mxu0 %v488
    %526 = vmatpush1.bf16.msra.mxu0 %v487
    %527 = vmatprep.subr.bf16.mxu0 %v486
    %528 = vmatpush1.bf16.msra.mxu0 %v485
    %529 = vmatprep.subr.bf16.mxu0 %v484
    %530 = vmatpush1.bf16.msra.mxu0 %v483
    %531 = vmatprep.subr.bf16.mxu0 0
    %532 = vmatpush2.bf16.msra.mxu0 0
    %533 = vmatprep.subr.bf16.mxu0 0
    %534 = vmatpush2.bf16.msra.mxu0 0
    %535 = vmatprep.subr.bf16.mxu0 0
    %536 = vmatpush2.bf16.msra.mxu0 0
    %537 = vmatprep.subr.bf16.mxu0 0
    %538 = vmatpush2.bf16.msra.mxu0 0
    %539 = vmatprep.subr.bf16.mxu0 0
    %540 = vmatpush2.bf16.msra.mxu0 0
    %541 = vmatprep.subr.bf16.mxu0 0
    %542 = vmatpush2.bf16.msra.mxu0 0
    %543 = vmatprep.subr.bf16.mxu0 0
    %544 = vmatpush2.bf16.msra.mxu0 0
    %545 = vmatprep.subr.bf16.mxu0 0
    %546 = vmatpush2.bf16.msra.mxu0 0
    %547 = vmatprep.mubr.bf16.mxu0 0
    %548 = vmatmul.mubr.bf16.gmra.mxu0 %v414
    %v549 = vpop.f32.mrf.mxu0
    %v550 = vadd.f32 0.0, %v549
    %v551 = vpop.f32.mrf.mxu0
    %v552 = vadd.f32 0.0, %v551
    %v553 = vpop.f32.mrf.mxu0
    %v554 = vadd.f32 0.0, %v553
    %v555 = vpop.f32.mrf.mxu0
    %v556 = vadd.f32 0.0, %v555
    %557 = vmatprep.mubr.bf16.mxu0 0
    %558 = vmatmul.mubr.bf16.gmra.mxu0 %v415
    %v559 = vpop.f32.mrf.mxu0
    %v560 = vadd.f32 0.0, %v559
    %v561 = vpop.f32.mrf.mxu0
    %v562 = vadd.f32 0.0, %v561
    %v563 = vpop.f32.mrf.mxu0
    %v564 = vadd.f32 0.0, %v563
    %v565 = vpop.f32.mrf.mxu0
    %v566 = vadd.f32 0.0, %v565
    %567 = vmatprep.mubr.bf16.mxu0 0
    %568 = vmatmul.mubr.bf16.gmra.mxu0 %v416
    %v569 = vpop.f32.mrf.mxu0
    %v570 = vadd.f32 0.0, %v569
    %v571 = vpop.f32.mrf.mxu0
    %v572 = vadd.f32 0.0, %v571
    %v573 = vpop.f32.mrf.mxu0
    %v574 = vadd.f32 0.0, %v573
    %v575 = vpop.f32.mrf.mxu0
    %v576 = vadd.f32 0.0, %v575
    %577 = vmatprep.mubr.bf16.mxu0 0
    %578 = vmatmul.mubr.bf16.gmra.mxu0 %v417
    %v579 = vpop.f32.mrf.mxu0
    %v580 = vadd.f32 0.0, %v579
    %v581 = vpop.f32.mrf.mxu0
    %v582 = vadd.f32 0.0, %v581
    %v583 = vpop.f32.mrf.mxu0
    %v584 = vadd.f32 0.0, %v583
    %v585 = vpop.f32.mrf.mxu0
    %v586 = vadd.f32 0.0, %v585
    %587 = vdwg.mxu0
    %v588 = vpack.c.bf16 %v554, %v550
    %v589 = vpack.c.bf16 %v564, %v560
    %v590 = vpack.c.bf16 %v574, %v570
    %v591 = vpack.c.bf16 %v584, %v580
    %592 = vmatprep.subr.bf16.mxu0 0
    %593 = vmatpush1.bf16.msra.mxu0 0
    %594 = vmatprep.subr.bf16.mxu0 0
    %595 = vmatpush1.bf16.msra.mxu0 0
    %596 = vmatprep.subr.bf16.mxu0 0
    %597 = vmatpush1.bf16.msra.mxu0 0
    %598 = vmatprep.subr.bf16.mxu0 0
    %599 = vmatpush1.bf16.msra.mxu0 0
    %600 = vmatprep.subr.bf16.mxu0 0
    %601 = vmatpush1.bf16.msra.mxu0 %v591
    %602 = vmatprep.subr.bf16.mxu0 0
    %603 = vmatpush1.bf16.msra.mxu0 %v590
    %604 = vmatprep.subr.bf16.mxu0 0
    %605 = vmatpush1.bf16.msra.mxu0 %v589
    %606 = vmatprep.subr.bf16.mxu0 0
    %607 = vmatpush1.bf16.msra.mxu0 %v588
    %608 = vmatprep.subr.bf16.mxu0 0
    %609 = vmatpush2.bf16.msra.mxu0 0
    %610 = vmatprep.subr.bf16.mxu0 0
    %611 = vmatpush2.bf16.msra.mxu0 0
    %612 = vmatprep.subr.bf16.mxu0 0
    %613 = vmatpush2.bf16.msra.mxu0 0
    %614 = vmatprep.subr.bf16.mxu0 0
    %615 = vmatpush2.bf16.msra.mxu0 0
    %616 = vmatprep.subr.bf16.mxu0 0
    %617 = vmatpush2.bf16.msra.mxu0 0
    %618 = vmatprep.subr.bf16.mxu0 0
    %619 = vmatpush2.bf16.msra.mxu0 0
    %620 = vmatprep.subr.bf16.mxu0 0
    %621 = vmatpush2.bf16.msra.mxu0 0
    %622 = vmatprep.subr.bf16.mxu0 0
    %623 = vmatpush2.bf16.msra.mxu0 0
    %624 = vmatprep.mubr.bf16.mxu0 0
    %625 = vmatmul.mubr.bf16.gmra.mxu0 %v315
    %v626 = vpop.f32.mrf.mxu0
    %v627 = vadd.f32 %v552, %v626
    %v628 = vpop.f32.mrf.mxu0
    %v629 = vpop.f32.mrf.mxu0
    %v630 = vadd.f32 %v556, %v629
    %v631 = vpop.f32.mrf.mxu0
    %632 = vmatprep.mubr.bf16.mxu0 0
    %633 = vmatmul.mubr.bf16.gmra.mxu0 %v318
    %v634 = vpop.f32.mrf.mxu0
    %v635 = vadd.f32 %v562, %v634
    %v636 = vpop.f32.mrf.mxu0
    %v637 = vpop.f32.mrf.mxu0
    %v638 = vadd.f32 %v566, %v637
    %v639 = vpop.f32.mrf.mxu0
    %640 = vmatprep.mubr.bf16.mxu0 0
    %641 = vmatmul.mubr.bf16.gmra.mxu0 %v321
    %v642 = vpop.f32.mrf.mxu0
    %v643 = vadd.f32 %v572, %v642
    %v644 = vpop.f32.mrf.mxu0
    %v645 = vpop.f32.mrf.mxu0
    %v646 = vadd.f32 %v576, %v645
    %v647 = vpop.f32.mrf.mxu0
    %648 = vmatprep.mubr.bf16.mxu0 0
    %649 = vmatmul.mubr.bf16.gmra.mxu0 %v324
    %v650 = vpop.f32.mrf.mxu0
    %v651 = vadd.f32 %v582, %v650
    %v652 = vpop.f32.mrf.mxu0
    %v653 = vpop.f32.mrf.mxu0
    %v654 = vadd.f32 %v586, %v653
    %v655 = vpop.f32.mrf.mxu0
    %656 = vdwg.mxu0
    %s657 = scalar_lea.vmem %s3, 1
    %v658 = vld [vmem:[%s657] sm:$0x1]
    %v660 = vlaneseq
    %v661 = vshrl.u32 %v660, 7
    %v662 = vsub.s32 0, %v661
    %v663 = vrot.slane %v658, %v662
    %v665 = vadd.f32 %v627, %v663
    %v666 = vadd.f32 %v630, %v663
    %v667 = vadd.f32 %v635, %v663
    %v668 = vadd.f32 %v638, %v663
    %v669 = vadd.f32 %v643, %v663
    %v670 = vadd.f32 %v646, %v663
    %v671 = vadd.f32 %v651, %v663
    %v672 = vadd.f32 %v654, %v663
    %v673 = vpack.c.bf16 %v666, %v665
    %v674 = vpack.c.bf16 %v668, %v667
    %v675 = vpack.c.bf16 %v670, %v669
    %v676 = vpack.c.bf16 %v672, %v671
    %v677 = vld [vmem:[#allocation8] sm:$0xf]
    %v678 = vld [vmem:[#allocation8 + $0x4] sm:$0xf]
    %v679 = vld [vmem:[#allocation8 + $0x8] sm:$0xf]
    %v680 = vld [vmem:[#allocation8 + $0xc] sm:$0xf]
    %v681 = vld [vmem:[#allocation8 + $0x10] sm:$0xf]
    %v682 = vld [vmem:[#allocation8 + $0x14] sm:$0xf]
    %v683 = vld [vmem:[#allocation8 + $0x18] sm:$0xf]
    %v684 = vld [vmem:[#allocation8 + $0x1c] sm:$0xf]
    %v685 = vld [vmem:[#allocation8 + $0x20] sm:$0xf]
    %v686 = vld [vmem:[#allocation8 + $0x24] sm:$0xf]
    %v687 = vld [vmem:[#allocation8 + $0x28] sm:$0xf]
    %v688 = vld [vmem:[#allocation8 + $0x2c] sm:$0xf]
    %v689 = vld [vmem:[#allocation8 + $0x30] sm:$0xf]
    %v690 = vld [vmem:[#allocation8 + $0x34] sm:$0xf]
    %v691 = vld [vmem:[#allocation8 + $0x38] sm:$0xf]
    %v692 = vld [vmem:[#allocation8 + $0x3c] sm:$0xf]
    %v693 = vld [vmem:[%s5] sm:$0x1]
    %v695 = vlaneseq
    %v696 = vshrl.u32 %v695, 7
    %v697 = vsub.s32 0, %v696
    %v698 = vrot.slane %v693, %v697
    %v716 = vunpack.c.l.b16 %v677
    %v717 = vunpack.c.l.b16 %v678
    %v718 = vunpack.c.l.b16 %v679
    %v719 = vunpack.c.l.b16 %v680
    %v720 = vunpack.c.l.b16 %v681
    %v721 = vunpack.c.l.b16 %v682
    %v722 = vunpack.c.l.b16 %v683
    %v723 = vunpack.c.l.b16 %v684
    %v724 = vunpack.c.l.b16 %v685
    %v725 = vunpack.c.l.b16 %v686
    %v726 = vunpack.c.l.b16 %v687
    %v727 = vunpack.c.l.b16 %v688
    %v728 = vunpack.c.l.b16 %v689
    %v729 = vunpack.c.l.b16 %v690
    %v730 = vunpack.c.l.b16 %v691
    %v731 = vunpack.c.l.b16 %v692
    %v732 = vpack.c.b16 %v717, %v716
    %v733 = vpack.c.b16 %v719, %v718
    %v734 = vpack.c.b16 %v721, %v720
    %v735 = vpack.c.b16 %v723, %v722
    %v736 = vpack.c.b16 %v725, %v724
    %v737 = vpack.c.b16 %v727, %v726
    %v738 = vpack.c.b16 %v729, %v728
    %v739 = vpack.c.b16 %v731, %v730
    %748 = vmatprep.subr.bf16.mxu0 0
    %749 = vmatpush1.bf16.msra.mxu0 %v739
    %750 = vmatprep.subr.bf16.mxu0 0
    %751 = vmatpush1.bf16.msra.mxu0 %v738
    %752 = vmatprep.subr.bf16.mxu0 0
    %753 = vmatpush1.bf16.msra.mxu0 %v737
    %754 = vmatprep.subr.bf16.mxu0 0
    %755 = vmatpush1.bf16.msra.mxu0 %v736
    %756 = vmatprep.subr.bf16.mxu0 0
    %757 = vmatpush1.bf16.msra.mxu0 %v735
    %758 = vmatprep.subr.bf16.mxu0 0
    %759 = vmatpush1.bf16.msra.mxu0 %v734
    %760 = vmatprep.subr.bf16.mxu0 0
    %761 = vmatpush1.bf16.msra.mxu0 %v733
    %762 = vmatprep.subr.bf16.mxu0 0
    %763 = vmatpush1.bf16.msra.mxu0 %v732
    %764 = vmatprep.subr.bf16.mxu0 0
    %765 = vmatpush2.bf16.msra.mxu0 0
    %766 = vmatprep.subr.bf16.mxu0 0
    %767 = vmatpush2.bf16.msra.mxu0 0
    %768 = vmatprep.subr.bf16.mxu0 0
    %769 = vmatpush2.bf16.msra.mxu0 0
    %770 = vmatprep.subr.bf16.mxu0 0
    %771 = vmatpush2.bf16.msra.mxu0 0
    %772 = vmatprep.subr.bf16.mxu0 0
    %773 = vmatpush2.bf16.msra.mxu0 0
    %774 = vmatprep.subr.bf16.mxu0 0
    %775 = vmatpush2.bf16.msra.mxu0 0
    %776 = vmatprep.subr.bf16.mxu0 0
    %777 = vmatpush2.bf16.msra.mxu0 0
    %778 = vmatprep.subr.bf16.mxu0 0
    %779 = vmatpush2.bf16.msra.mxu0 0
    %780 = vmatprep.mubr.bf16.mxu0 0
    %781 = vmatmul.mubr.bf16.gmra.mxu0 %v673
    %v782 = vpop.f32.mrf.mxu0
    %v783 = vadd.f32 %v698, %v782
    %v784 = vpop.f32.mrf.mxu0
    %v785 = vpop.f32.mrf.mxu0
    %v786 = vadd.f32 %v698, %v785
    %v787 = vpop.f32.mrf.mxu0
    %788 = vmatprep.mubr.bf16.mxu0 0
    %789 = vmatmul.mubr.bf16.gmra.mxu0 %v674
    %v790 = vpop.f32.mrf.mxu0
    %v791 = vadd.f32 %v698, %v790
    %v792 = vpop.f32.mrf.mxu0
    %v793 = vpop.f32.mrf.mxu0
    %v794 = vadd.f32 %v698, %v793
    %v795 = vpop.f32.mrf.mxu0
    %796 = vmatprep.mubr.bf16.mxu0 0
    %797 = vmatmul.mubr.bf16.gmra.mxu0 %v675
    %v798 = vpop.f32.mrf.mxu0
    %v799 = vadd.f32 %v698, %v798
    %v800 = vpop.f32.mrf.mxu0
    %v801 = vpop.f32.mrf.mxu0
    %v802 = vadd.f32 %v698, %v801
    %v803 = vpop.f32.mrf.mxu0
    %804 = vmatprep.mubr.bf16.mxu0 0
    %805 = vmatmul.mubr.bf16.gmra.mxu0 %v676
    %v806 = vpop.f32.mrf.mxu0
    %v807 = vadd.f32 %v698, %v806
    %v808 = vpop.f32.mrf.mxu0
    %v809 = vpop.f32.mrf.mxu0
    %v810 = vadd.f32 %v698, %v809
    %v811 = vpop.f32.mrf.mxu0
    %812 = vdwg.mxu0
    %813 = vst [vmem:[#allocation10] sm:$0xff] %v783
    %814 = vst [vmem:[#allocation10 + $0x8] sm:$0xff] %v786
    %815 = vst [vmem:[#allocation10 + $0x10] sm:$0xff] %v791
    %816 = vst [vmem:[#allocation10 + $0x18] sm:$0xff] %v794
    %817 = vst [vmem:[#allocation10 + $0x20] sm:$0xff] %v799
    %818 = vst [vmem:[#allocation10 + $0x28] sm:$0xff] %v802
    %819 = vst [vmem:[#allocation10 + $0x30] sm:$0xff] %v807
    %820 = vst [vmem:[#allocation10 + $0x38] sm:$0xff] %v810
    // Predicated region
    $region42: #{tpu_custom_call.1} parent=1 // pred_check
      _
    $region43: #{tpu_custom_call.1} parent=1 // pred_check_branch
      %822 = sbr.rel (0) target = $region45
    $region44: #{tpu_custom_call.1} parent=1 // pred_region
      %s824 = ssub.s32 1024, 1024
      %825 = vsyncadd [#allocation4], %s824
      %s826 = sshll.u32 [#allocation10], 4
      %s827 = int_to_ptr.vmem [resolvable:$true] %s826
      %832 = dma.vmem_to_hbm [thread:$0]  %s827, 1024, %s6, [#allocation4], 128, 128, 8
    $region45: #{tpu_custom_call.1} parent=1 // pred_fallthru
      _
    // Predicated region
    $region46: #{tpu_custom_call.1} parent=1 // pred_check
      _
    $region47: #{tpu_custom_call.1} parent=1 // pred_check_branch
      %834 = sbr.rel (0) target = $region49
    $region48: #{tpu_custom_call.1} parent=1 // pred_region
      %835 = dma.done [#allocation4], 1024
    $region49: #{tpu_custom_call.1} parent=1 // pred_fallthru
      _
    %836 = vsyncpa [#allocation3], 1
    %837 = vsyncpa [#allocation6], 1
    %838 = vsyncpa [#allocation9], 1
    %839 = vsyncpa [#allocation4], 1

</llo_original>
